<compile_context>
chip_gen: v7x
topology: tpu7x:2x2x1
jax: 0.10.0
libtpu: 0.0.40
codegen_flags: <defaults>
</compile_context>

<pallas_src>
import jax
import jax.numpy as jnp
from jax.experimental import pallas as pl
from jax.experimental.pallas import tpu as pltpu


def projection_head_kernel(x_ref, wb_ref, bb_ref, wp_ref, bp_ref, wf_ref, bf_ref, o_ref):
    # x_ref: (block_b, C*H*W) tile in VMEM; weights/biases fully VMEM-resident.
    x = x_ref[...].astype(jnp.float32)

    # --- synthetic backbone: (fused GAP + Linear) + ReLU; MXU does the spatial reduction ---
    feat = jnp.dot(x, wb_ref[...], preferred_element_type=jnp.float32) + bb_ref[...]  # (TB, E)
    feat = jnp.maximum(feat, 0.0)

    # --- flatten(start_dim=1) is a no-op: feat is already (TB, E) ---

    # --- projection: Linear(embedding_dim -> projection_dim) ---
    proj = jnp.dot(feat, wp_ref[...], preferred_element_type=jnp.float32) + bp_ref[...]  # (TB, P)

    # --- fc: Linear(projection_dim -> num_classes), output padded to lane-dense width ---
    out = jnp.dot(proj, wf_ref[...], preferred_element_type=jnp.float32) + bf_ref[...]   # (TB, NCp)

    o_ref[...] = out.astype(o_ref.dtype)


def projection_head(x, w_backbone, b_backbone, w_proj, b_proj, w_fc, b_fc, *, block_b=None):
    """x: (B, C, H, W) NCHW. Returns (B, num_classes)."""
    B, C, H, W = x.shape
    HW = H * W
    E = w_backbone.shape[1]
    P = w_proj.shape[1]
    NC = w_fc.shape[1]

    f32 = jnp.float32

    # Fuse the average pool into the first matmul:
    #   W_big[c*HW + s, e] = w_backbone[c, e] / HW   =>   x_flat @ W_big == mean_s(x) @ w_backbone
    w_big = jnp.repeat(w_backbone.astype(f32), HW, axis=0) * (1.0 / float(HW))   # (C*HW, E)
    b_backbone = b_backbone.astype(f32).reshape(1, E)
    w_proj = w_proj.astype(f32)
    b_proj = b_proj.astype(f32).reshape(1, P)

    # Lane-dense output: pad num_classes up to a multiple of 128 (zero columns, sliced off later).
    NCp = max(128, ((NC + 127) // 128) * 128)
    w_fc_p = jnp.zeros((P, NCp), f32).at[:, :NC].set(w_fc.astype(f32))
    b_fc_p = jnp.zeros((1, NCp), f32).at[:, :NC].set(b_fc.astype(f32).reshape(1, NC))

    # Batch tiling: sublane-aligned (multiple of 8) tiles, up to 128 rows per grid step.
    if block_b is None:
        block_b = 128 if B >= 128 else ((B + 7) // 8) * 8
    Bp = ((B + block_b - 1) // block_b) * block_b

    x2 = x.reshape(B, C * HW)                       # glue reshape (plain JAX)
    if Bp != B:
        x2 = jnp.pad(x2, ((0, Bp - B), (0, 0)))     # padded rows sliced off after the call

    grid = (Bp // block_b,)

    resident = lambda shape: pl.BlockSpec(shape, lambda i: (0, 0))  # stays in VMEM across steps

    out_padded = pl.pallas_call(
        projection_head_kernel,
        out_shape=jax.ShapeDtypeStruct((Bp, NCp), f32),
        grid=grid,
        in_specs=[
            pl.BlockSpec((block_b, C * HW), lambda i: (i, 0)),   # x tile, pipelined over batch
            resident((C * HW, E)),
            resident((1, E)),
            resident((E, P)),
            resident((1, P)),
            resident((P, NCp)),
            resident((1, NCp)),
        ],
        out_specs=pl.BlockSpec((block_b, NCp), lambda i: (i, 0)),
        compiler_params=pltpu.CompilerParams(
            dimension_semantics=("parallel",)),   # shards batch tiles across TCs on v7x
    )(x2, w_big, b_backbone, w_proj, b_proj, w_fc_p, b_fc_p)

    return out_padded[:B, :NC]


def _reference(x, w_backbone, b_backbone, w_proj, b_proj, w_fc, b_fc):
    pooled = jnp.mean(x.astype(jnp.float32), axis=(2, 3))
    feat = jnp.maximum(pooled @ w_backbone + b_backbone, 0.0)
    proj = feat @ w_proj + b_proj
    return proj @ w_fc + b_fc


if __name__ == "__main__":
    # Small shapes consistent with the module.
    B, C, H, W = 2, 4, 16, 16
    embedding_dim, projection_dim, num_classes = 32, 16, 10

    key = jax.random.PRNGKey(0)
    k0, k1, k2, k3, k4, k5, k6 = jax.random.split(key, 7)

    x = jax.random.normal(k0, (B, C, H, W), dtype=jnp.float32)

    # Deterministic parameter init (weights stored as (in, out)).
    w_backbone = jax.random.normal(k1, (C, embedding_dim), dtype=jnp.float32) * 0.1
    b_backbone = jax.random.normal(k2, (1, embedding_dim), dtype=jnp.float32) * 0.1
    w_proj = jax.random.normal(k3, (embedding_dim, projection_dim), dtype=jnp.float32) * 0.1
    b_proj = jax.random.normal(k4, (embedding_dim, projection_dim)[1:] and
                               (1, projection_dim), dtype=jnp.float32) * 0.1
    w_fc = jax.random.normal(k5, (projection_dim, num_classes), dtype=jnp.float32) * 0.1
    b_fc = jax.random.normal(k6, (1, num_classes), dtype=jnp.float32) * 0.1

    out = projection_head(x, w_backbone, b_backbone, w_proj, b_proj, w_fc, b_fc)
    out = jax.block_until_ready(out)

    ref = _reference(x, w_backbone, b_backbone[0], w_proj, b_proj[0], w_fc, b_fc[0])
    assert out.shape == (B, num_classes)
    assert jnp.allclose(out, ref, atol=1e-4, rtol=1e-4), "mismatch vs JAX reference"

    print("KERNEL_OK")
</pallas_src>

<mosaic_0001>
module attributes {stable_mosaic.version = 11 : i64} {
  func.func @projection_head_kernel(%arg0: i32, %arg1: memref<8x1024xf32, #tpu.memory_space<vmem>>, %arg2: memref<1024x32xf32, #tpu.memory_space<vmem>>, %arg3: memref<1x32xf32, #tpu.memory_space<vmem>>, %arg4: memref<32x16xf32, #tpu.memory_space<vmem>>, %arg5: memref<1x16xf32, #tpu.memory_space<vmem>>, %arg6: memref<16x128xf32, #tpu.memory_space<vmem>>, %arg7: memref<1x128xf32, #tpu.memory_space<vmem>>, %arg8: memref<8x128xf32, #tpu.memory_space<vmem>>) attributes {dimension_semantics = [#tpu.dimension_semantics<parallel>], iteration_bounds = array<i64: 1>, scalar_prefetch = 0 : i64, scratch_operands = 0 : i64, tpu.core_type = #tpu.core_type<tc>, window_params = [{transform_indices = @transform_0, window_bounds = array<i64: 8, 1024>}, {pipeline_mode = #tpu.pipeline_mode<synchronous>, transform_indices = @transform_1, window_bounds = array<i64: 1024, 32>}, {pipeline_mode = #tpu.pipeline_mode<synchronous>, transform_indices = @transform_2, window_bounds = array<i64: 1, 32>}, {pipeline_mode = #tpu.pipeline_mode<synchronous>, transform_indices = @transform_3, window_bounds = array<i64: 32, 16>}, {pipeline_mode = #tpu.pipeline_mode<synchronous>, transform_indices = @transform_4, window_bounds = array<i64: 1, 16>}, {pipeline_mode = #tpu.pipeline_mode<synchronous>, transform_indices = @transform_5, window_bounds = array<i64: 16, 128>}, {pipeline_mode = #tpu.pipeline_mode<synchronous>, transform_indices = @transform_6, window_bounds = array<i64: 1, 128>}, {transform_indices = @transform_7, window_bounds = array<i64: 8, 128>}]} {
    %c0 = arith.constant 0 : index
    %c0_0 = arith.constant 0 : index
    %0 = vector.load %arg1[%c0, %c0_0] : memref<8x1024xf32, #tpu.memory_space<vmem>>, vector<8x1024xf32>
    %c0_1 = arith.constant 0 : index
    %c0_2 = arith.constant 0 : index
    %1 = vector.load %arg2[%c0_1, %c0_2] : memref<1024x32xf32, #tpu.memory_space<vmem>>, vector<1024x32xf32>
    %cst = arith.constant dense<0.000000e+00> : vector<8x32xf32>
    %2 = tpu.matmul %0, %1, %cst {dimension_numbers = #tpu.dot_dimension_numbers<[1], [0], [0], [1], [0, 0, 1, 1], [], []>} : vector<8x1024xf32>, vector<1024x32xf32>, vector<8x32xf32> -> vector<8x32xf32>
    %c0_3 = arith.constant 0 : index
    %c0_4 = arith.constant 0 : index
    %3 = vector.load %arg3[%c0_3, %c0_4] : memref<1x32xf32, #tpu.memory_space<vmem>>, vector<1x32xf32>
    %4 = vector.broadcast %3 : vector<1x32xf32> to vector<8x32xf32>
    %5 = arith.addf %2, %4 : vector<8x32xf32>
    %cst_5 = arith.constant 0.000000e+00 : f32
    %6 = vector.broadcast %cst_5 : f32 to vector<8x32xf32>
    %7 = arith.maximumf %5, %6 : vector<8x32xf32>
    %c0_6 = arith.constant 0 : index
    %c0_7 = arith.constant 0 : index
    %8 = vector.load %arg4[%c0_6, %c0_7] : memref<32x16xf32, #tpu.memory_space<vmem>>, vector<32x16xf32>
    %cst_8 = arith.constant dense<0.000000e+00> : vector<8x16xf32>
    %9 = tpu.matmul %7, %8, %cst_8 {dimension_numbers = #tpu.dot_dimension_numbers<[1], [0], [0], [1], [0, 0, 1, 1], [], []>} : vector<8x32xf32>, vector<32x16xf32>, vector<8x16xf32> -> vector<8x16xf32>
    %c0_9 = arith.constant 0 : index
    %c0_10 = arith.constant 0 : index
    %10 = vector.load %arg5[%c0_9, %c0_10] : memref<1x16xf32, #tpu.memory_space<vmem>>, vector<1x16xf32>
    %11 = vector.broadcast %10 : vector<1x16xf32> to vector<8x16xf32>
    %12 = arith.addf %9, %11 : vector<8x16xf32>
    %c0_11 = arith.constant 0 : index
    %c0_12 = arith.constant 0 : index
    %13 = vector.load %arg6[%c0_11, %c0_12] : memref<16x128xf32, #tpu.memory_space<vmem>>, vector<16x128xf32>
    %cst_13 = arith.constant dense<0.000000e+00> : vector<8x128xf32>
    %14 = tpu.matmul %12, %13, %cst_13 {dimension_numbers = #tpu.dot_dimension_numbers<[1], [0], [0], [1], [0, 0, 1, 1], [], []>} : vector<8x16xf32>, vector<16x128xf32>, vector<8x128xf32> -> vector<8x128xf32>
    %c0_14 = arith.constant 0 : index
    %c0_15 = arith.constant 0 : index
    %15 = vector.load %arg7[%c0_14, %c0_15] : memref<1x128xf32, #tpu.memory_space<vmem>>, vector<1x128xf32>
    %16 = vector.broadcast %15 : vector<1x128xf32> to vector<8x128xf32>
    %17 = arith.addf %14, %16 : vector<8x128xf32>
    %c0_16 = arith.constant 0 : index
    %c0_17 = arith.constant 0 : index
    %18 = vector.load %arg8[%c0_16, %c0_17] : memref<8x128xf32, #tpu.memory_space<vmem>>, vector<8x128xf32>
    tpu.vector_store %arg8[%c0_16, %c0_17], %17 {strides = array<i32>} : memref<8x128xf32, #tpu.memory_space<vmem>>, vector<8x128xf32>,
    return
  }
  func.func @transform_0(%arg0: i32) -> (i32, i32) {
    %c0_i32 = arith.constant 0 : i32
    %c0_i32_0 = arith.constant 0 : i32
    return %arg0, %c0_i32 : i32, i32
  }
  func.func @transform_1(%arg0: i32) -> (i32, i32) {
    %c0_i32 = arith.constant 0 : i32
    %c0_i32_0 = arith.constant 0 : i32
    %c0_i32_1 = arith.constant 0 : i32
    return %c0_i32, %c0_i32_0 : i32, i32
  }
  func.func @transform_2(%arg0: i32) -> (i32, i32) {
    %c0_i32 = arith.constant 0 : i32
    %c0_i32_0 = arith.constant 0 : i32
    %c0_i32_1 = arith.constant 0 : i32
    return %c0_i32, %c0_i32_0 : i32, i32
  }
  func.func @transform_3(%arg0: i32) -> (i32, i32) {
    %c0_i32 = arith.constant 0 : i32
    %c0_i32_0 = arith.constant 0 : i32
    %c0_i32_1 = arith.constant 0 : i32
    return %c0_i32, %c0_i32_0 : i32, i32
  }
  func.func @transform_4(%arg0: i32) -> (i32, i32) {
    %c0_i32 = arith.constant 0 : i32
    %c0_i32_0 = arith.constant 0 : i32
    %c0_i32_1 = arith.constant 0 : i32
    return %c0_i32, %c0_i32_0 : i32, i32
  }
  func.func @transform_5(%arg0: i32) -> (i32, i32) {
    %c0_i32 = arith.constant 0 : i32
    %c0_i32_0 = arith.constant 0 : i32
    %c0_i32_1 = arith.constant 0 : i32
    return %c0_i32, %c0_i32_0 : i32, i32
  }
  func.func @transform_6(%arg0: i32) -> (i32, i32) {
    %c0_i32 = arith.constant 0 : i32
    %c0_i32_0 = arith.constant 0 : i32
    %c0_i32_1 = arith.constant 0 : i32
    return %c0_i32, %c0_i32_0 : i32, i32
  }
  func.func @transform_7(%arg0: i32) -> (i32, i32) {
    %c0_i32 = arith.constant 0 : i32
    %c0_i32_0 = arith.constant 0 : i32
    return %arg0, %c0_i32 : i32, i32
  }
}

</mosaic_0001>

<llo_original>
// kernel: tpu_custom_call.1
$region0: #{tpu_custom_call.1}
  #allocation0 [shape = 'u32[]', space=smem, size = 0x4, offset = 0x4, fixed_abs, tag = 'smem constant byte address 0x4 - core index']
  #allocation1 [shape = 'u32[144,128]{1,0:T(1,128)}', space=vmem, size = 0x12000, scoped, tag = 'internal scratch']
  %s0 = inlined_call_operand.vmem [shape: f32[8,1024], index: 0, kind: input, shape index: {}]
  %s1 = inlined_call_operand.vmem [shape: f32[1024,32], index: 1, kind: input, shape index: {}]
  %s2 = inlined_call_operand.vmem [shape: f32[1,32], index: 2, kind: input, shape index: {}]
  %s3 = inlined_call_operand.vmem [shape: f32[32,16], index: 3, kind: input, shape index: {}]
  %s4 = inlined_call_operand.vmem [shape: f32[1,16], index: 4, kind: input, shape index: {}]
  %s5 = inlined_call_operand.vmem [shape: f32[16,128], index: 5, kind: input, shape index: {}]
  %s6 = inlined_call_operand.vmem [shape: f32[1,128], index: 6, kind: input, shape index: {}]
  %s7 = inlined_call_operand.hbm [shape: f32[8,128], index: 7, kind: output, shape index: {}]
  %s8 = sld [smem:[#allocation0]]
  $region38: #{tpu_custom_call.1} parent=0
    _
  %s10 = ssub.s32 1, %s8
  %s11 = scalar_select 0, %s10, %s8
  $region1: #{tpu_custom_call.1} parent=0
    #allocation2 [shape = 'u8[4096]{0}', space=vmem, size = 0x1000, scoped, tag = 'output window, operand 0, single buffered']
    #allocation3 [shape = 's32[1]{0}', space=sflag, size = 0x4, scoped, tag = 'scoped memory for tpu_custom_call.1']
    %12 = vsyncpa [#allocation3], 0
    // Predicated region
    $region2: #{tpu_custom_call.1} parent=1 // pred_check
      _
    $region3: #{tpu_custom_call.1} parent=1 // pred_check_branch
      %14 = sbr.rel (0) target = $region5
    $region4: #{tpu_custom_call.1} parent=1 // pred_region
      _
    $region5: #{tpu_custom_call.1} parent=1 // pred_fallthru
      _
    // Predicated region
    $region6: #{tpu_custom_call.1} parent=1 // pred_check
      _
    $region7: #{tpu_custom_call.1} parent=1 // pred_check_branch
      %16 = sbr.rel (0) target = $region9
    $region8: #{tpu_custom_call.1} parent=1 // pred_region
      _
    $region9: #{tpu_custom_call.1} parent=1 // pred_fallthru
      _
    // Predicated region
    $region10: #{tpu_custom_call.1} parent=1 // pred_check
      _
    $region11: #{tpu_custom_call.1} parent=1 // pred_check_branch
      %18 = sbr.rel (0) target = $region13
    $region12: #{tpu_custom_call.1} parent=1 // pred_region
      _
    $region13: #{tpu_custom_call.1} parent=1 // pred_fallthru
      _
    // Predicated region
    $region14: #{tpu_custom_call.1} parent=1 // pred_check
      _
    $region15: #{tpu_custom_call.1} parent=1 // pred_check_branch
      %20 = sbr.rel (0) target = $region17
    $region16: #{tpu_custom_call.1} parent=1 // pred_region
      _
    $region17: #{tpu_custom_call.1} parent=1 // pred_fallthru
      _
    // Predicated region
    $region18: #{tpu_custom_call.1} parent=1 // pred_check
      _
    $region19: #{tpu_custom_call.1} parent=1 // pred_check_branch
      %22 = sbr.rel (0) target = $region21
    $region20: #{tpu_custom_call.1} parent=1 // pred_region
      _
    $region21: #{tpu_custom_call.1} parent=1 // pred_fallthru
      _
    // Predicated region
    $region22: #{tpu_custom_call.1} parent=1 // pred_check
      _
    $region23: #{tpu_custom_call.1} parent=1 // pred_check_branch
      %24 = sbr.rel (0) target = $region25
    $region24: #{tpu_custom_call.1} parent=1 // pred_region
      _
    $region25: #{tpu_custom_call.1} parent=1 // pred_fallthru
      _
    // Predicated region
    $region26: #{tpu_custom_call.1} parent=1 // pred_check
      _
    $region27: #{tpu_custom_call.1} parent=1 // pred_check_branch
      %26 = sbr.rel (0) target = $region29
    $region28: #{tpu_custom_call.1} parent=1 // pred_region
      _
    $region29: #{tpu_custom_call.1} parent=1 // pred_fallthru
      _
    %v27 = vld [vmem:[%s0] sm:$0xff]
    %v28 = vld [vmem:[%s0 + $0x8] sm:$0xff]
    %v29 = vld [vmem:[%s0 + $0x10] sm:$0xff]
    %v30 = vld [vmem:[%s0 + $0x18] sm:$0xff]
    %v31 = vld [vmem:[%s0 + $0x20] sm:$0xff]
    %v32 = vld [vmem:[%s0 + $0x28] sm:$0xff]
    %v33 = vld [vmem:[%s0 + $0x30] sm:$0xff]
    %v34 = vld [vmem:[%s0 + $0x38] sm:$0xff]
    %v35 = vld [vmem:[%s1] sm:$0xff]
    %v36 = vld [vmem:[%s1 + $0x8] sm:$0xff]
    %v37 = vld [vmem:[%s1 + $0x10] sm:$0xff]
    %v38 = vld [vmem:[%s1 + $0x18] sm:$0xff]
    %v39 = vld [vmem:[%s1 + $0x20] sm:$0xff]
    %v40 = vld [vmem:[%s1 + $0x28] sm:$0xff]
    %v41 = vld [vmem:[%s1 + $0x30] sm:$0xff]
    %v42 = vld [vmem:[%s1 + $0x38] sm:$0xff]
    %v43 = vld [vmem:[%s1 + $0x40] sm:$0xff]
    %v44 = vld [vmem:[%s1 + $0x48] sm:$0xff]
    %v45 = vld [vmem:[%s1 + $0x50] sm:$0xff]
    %v46 = vld [vmem:[%s1 + $0x58] sm:$0xff]
    %v47 = vld [vmem:[%s1 + $0x60] sm:$0xff]
    %v48 = vld [vmem:[%s1 + $0x68] sm:$0xff]
    %v49 = vld [vmem:[%s1 + $0x70] sm:$0xff]
    %v50 = vld [vmem:[%s1 + $0x78] sm:$0xff]
    %v51 = vld [vmem:[%s1 + $0x80] sm:$0xff]
    %v52 = vld [vmem:[%s1 + $0x88] sm:$0xff]
    %v53 = vld [vmem:[%s1 + $0x90] sm:$0xff]
    %v54 = vld [vmem:[%s1 + $0x98] sm:$0xff]
    %v55 = vld [vmem:[%s1 + $0xa0] sm:$0xff]
    %v56 = vld [vmem:[%s1 + $0xa8] sm:$0xff]
    %v57 = vld [vmem:[%s1 + $0xb0] sm:$0xff]
    %v58 = vld [vmem:[%s1 + $0xb8] sm:$0xff]
    %v59 = vld [vmem:[%s1 + $0xc0] sm:$0xff]
    %v60 = vld [vmem:[%s1 + $0xc8] sm:$0xff]
    %v61 = vld [vmem:[%s1 + $0xd0] sm:$0xff]
    %v62 = vld [vmem:[%s1 + $0xd8] sm:$0xff]
    %v63 = vld [vmem:[%s1 + $0xe0] sm:$0xff]
    %v64 = vld [vmem:[%s1 + $0xe8] sm:$0xff]
    %v65 = vld [vmem:[%s1 + $0xf0] sm:$0xff]
    %v66 = vld [vmem:[%s1 + $0xf8] sm:$0xff]
    %v67 = vld [vmem:[%s1 + $0x100] sm:$0xff]
    %v68 = vld [vmem:[%s1 + $0x108] sm:$0xff]
    %v69 = vld [vmem:[%s1 + $0x110] sm:$0xff]
    %v70 = vld [vmem:[%s1 + $0x118] sm:$0xff]
    %v71 = vld [vmem:[%s1 + $0x120] sm:$0xff]
    %v72 = vld [vmem:[%s1 + $0x128] sm:$0xff]
    %v73 = vld [vmem:[%s1 + $0x130] sm:$0xff]
    %v74 = vld [vmem:[%s1 + $0x138] sm:$0xff]
    %v75 = vld [vmem:[%s1 + $0x140] sm:$0xff]
    %v76 = vld [vmem:[%s1 + $0x148] sm:$0xff]
    %v77 = vld [vmem:[%s1 + $0x150] sm:$0xff]
    %v78 = vld [vmem:[%s1 + $0x158] sm:$0xff]
    %v79 = vld [vmem:[%s1 + $0x160] sm:$0xff]
    %v80 = vld [vmem:[%s1 + $0x168] sm:$0xff]
    %v81 = vld [vmem:[%s1 + $0x170] sm:$0xff]
    %v82 = vld [vmem:[%s1 + $0x178] sm:$0xff]
    %v83 = vld [vmem:[%s1 + $0x180] sm:$0xff]
    %v84 = vld [vmem:[%s1 + $0x188] sm:$0xff]
    %v85 = vld [vmem:[%s1 + $0x190] sm:$0xff]
    %v86 = vld [vmem:[%s1 + $0x198] sm:$0xff]
    %v87 = vld [vmem:[%s1 + $0x1a0] sm:$0xff]
    %v88 = vld [vmem:[%s1 + $0x1a8] sm:$0xff]
    %v89 = vld [vmem:[%s1 + $0x1b0] sm:$0xff]
    %v90 = vld [vmem:[%s1 + $0x1b8] sm:$0xff]
    %v91 = vld [vmem:[%s1 + $0x1c0] sm:$0xff]
    %v92 = vld [vmem:[%s1 + $0x1c8] sm:$0xff]
    %v93 = vld [vmem:[%s1 + $0x1d0] sm:$0xff]
    %v94 = vld [vmem:[%s1 + $0x1d8] sm:$0xff]
    %v95 = vld [vmem:[%s1 + $0x1e0] sm:$0xff]
    %v96 = vld [vmem:[%s1 + $0x1e8] sm:$0xff]
    %v97 = vld [vmem:[%s1 + $0x1f0] sm:$0xff]
    %v98 = vld [vmem:[%s1 + $0x1f8] sm:$0xff]
    %v99 = vld [vmem:[%s1 + $0x200] sm:$0xff]
    %v100 = vld [vmem:[%s1 + $0x208] sm:$0xff]
    %v101 = vld [vmem:[%s1 + $0x210] sm:$0xff]
    %v102 = vld [vmem:[%s1 + $0x218] sm:$0xff]
    %v103 = vld [vmem:[%s1 + $0x220] sm:$0xff]
    %v104 = vld [vmem:[%s1 + $0x228] sm:$0xff]
    %v105 = vld [vmem:[%s1 + $0x230] sm:$0xff]
    %v106 = vld [vmem:[%s1 + $0x238] sm:$0xff]
    %v107 = vld [vmem:[%s1 + $0x240] sm:$0xff]
    %v108 = vld [vmem:[%s1 + $0x248] sm:$0xff]
    %v109 = vld [vmem:[%s1 + $0x250] sm:$0xff]
    %v110 = vld [vmem:[%s1 + $0x258] sm:$0xff]
    %v111 = vld [vmem:[%s1 + $0x260] sm:$0xff]
    %v112 = vld [vmem:[%s1 + $0x268] sm:$0xff]
    %v113 = vld [vmem:[%s1 + $0x270] sm:$0xff]
    %v114 = vld [vmem:[%s1 + $0x278] sm:$0xff]
    %v115 = vld [vmem:[%s1 + $0x280] sm:$0xff]
    %v116 = vld [vmem:[%s1 + $0x288] sm:$0xff]
    %v117 = vld [vmem:[%s1 + $0x290] sm:$0xff]
    %v118 = vld [vmem:[%s1 + $0x298] sm:$0xff]
    %v119 = vld [vmem:[%s1 + $0x2a0] sm:$0xff]
    %v120 = vld [vmem:[%s1 + $0x2a8] sm:$0xff]
    %v121 = vld [vmem:[%s1 + $0x2b0] sm:$0xff]
    %v122 = vld [vmem:[%s1 + $0x2b8] sm:$0xff]
    %v123 = vld [vmem:[%s1 + $0x2c0] sm:$0xff]
    %v124 = vld [vmem:[%s1 + $0x2c8] sm:$0xff]
    %v125 = vld [vmem:[%s1 + $0x2d0] sm:$0xff]
    %v126 = vld [vmem:[%s1 + $0x2d8] sm:$0xff]
    %v127 = vld [vmem:[%s1 + $0x2e0] sm:$0xff]
    %v128 = vld [vmem:[%s1 + $0x2e8] sm:$0xff]
    %v129 = vld [vmem:[%s1 + $0x2f0] sm:$0xff]
    %v130 = vld [vmem:[%s1 + $0x2f8] sm:$0xff]
    %v131 = vld [vmem:[%s1 + $0x300] sm:$0xff]
    %v132 = vld [vmem:[%s1 + $0x308] sm:$0xff]
    %v133 = vld [vmem:[%s1 + $0x310] sm:$0xff]
    %v134 = vld [vmem:[%s1 + $0x318] sm:$0xff]
    %v135 = vld [vmem:[%s1 + $0x320] sm:$0xff]
    %v136 = vld [vmem:[%s1 + $0x328] sm:$0xff]
    %v137 = vld [vmem:[%s1 + $0x330] sm:$0xff]
    %v138 = vld [vmem:[%s1 + $0x338] sm:$0xff]
    %v139 = vld [vmem:[%s1 + $0x340] sm:$0xff]
    %v140 = vld [vmem:[%s1 + $0x348] sm:$0xff]
    %v141 = vld [vmem:[%s1 + $0x350] sm:$0xff]
    %v142 = vld [vmem:[%s1 + $0x358] sm:$0xff]
    %v143 = vld [vmem:[%s1 + $0x360] sm:$0xff]
    %v144 = vld [vmem:[%s1 + $0x368] sm:$0xff]
    %v145 = vld [vmem:[%s1 + $0x370] sm:$0xff]
    %v146 = vld [vmem:[%s1 + $0x378] sm:$0xff]
    %v147 = vld [vmem:[%s1 + $0x380] sm:$0xff]
    %v148 = vld [vmem:[%s1 + $0x388] sm:$0xff]
    %v149 = vld [vmem:[%s1 + $0x390] sm:$0xff]
    %v150 = vld [vmem:[%s1 + $0x398] sm:$0xff]
    %v151 = vld [vmem:[%s1 + $0x3a0] sm:$0xff]
    %v152 = vld [vmem:[%s1 + $0x3a8] sm:$0xff]
    %v153 = vld [vmem:[%s1 + $0x3b0] sm:$0xff]
    %v154 = vld [vmem:[%s1 + $0x3b8] sm:$0xff]
    %v155 = vld [vmem:[%s1 + $0x3c0] sm:$0xff]
    %v156 = vld [vmem:[%s1 + $0x3c8] sm:$0xff]
    %v157 = vld [vmem:[%s1 + $0x3d0] sm:$0xff]
    %v158 = vld [vmem:[%s1 + $0x3d8] sm:$0xff]
    %v159 = vld [vmem:[%s1 + $0x3e0] sm:$0xff]
    %v160 = vld [vmem:[%s1 + $0x3e8] sm:$0xff]
    %v161 = vld [vmem:[%s1 + $0x3f0] sm:$0xff]
    %v162 = vld [vmem:[%s1 + $0x3f8] sm:$0xff]
    %v163 = vld [vmem:[%s2] sm:$0x1]
    %v165 = vlaneseq
    %v166 = vshrl.u32 %v165, 7
    %v167 = vsub.s32 0, %v166
    %v168 = vrot.slane %v163, %v167
    %170 = vmatprep.subr.mxu0 0.0
    %171 = vmatpush1.msra.mxu0 %v35
    %172 = vmatprep.subr.mxu0 0.0
    %173 = vmatpush1.msra.mxu0 %v36
    %174 = vmatprep.subr.mxu0 0.0
    %175 = vmatpush1.msra.mxu0 %v37
    %176 = vmatprep.subr.mxu0 0.0
    %177 = vmatpush1.msra.mxu0 %v38
    %178 = vmatprep.subr.mxu0 0.0
    %179 = vmatpush1.msra.mxu0 %v39
    %180 = vmatprep.subr.mxu0 0.0
    %181 = vmatpush1.msra.mxu0 %v40
    %182 = vmatprep.subr.mxu0 0.0
    %183 = vmatpush1.msra.mxu0 %v41
    %184 = vmatprep.subr.mxu0 0.0
    %185 = vmatpush1.msra.mxu0 %v42
    %186 = vmatprep.subr.mxu0 0.0
    %187 = vmatpush1.msra.mxu0 %v43
    %188 = vmatprep.subr.mxu0 0.0
    %189 = vmatpush1.msra.mxu0 %v44
    %190 = vmatprep.subr.mxu0 0.0
    %191 = vmatpush1.msra.mxu0 %v45
    %192 = vmatprep.subr.mxu0 0.0
    %193 = vmatpush1.msra.mxu0 %v46
    %194 = vmatprep.subr.mxu0 0.0
    %195 = vmatpush1.msra.mxu0 %v47
    %196 = vmatprep.subr.mxu0 0.0
    %197 = vmatpush1.msra.mxu0 %v48
    %198 = vmatprep.subr.mxu0 0.0
    %199 = vmatpush1.msra.mxu0 %v49
    %200 = vmatprep.subr.mxu0 0.0
    %201 = vmatpush1.msra.mxu0 %v50
    %202 = vmatprep.subr.mxu0 0.0
    %203 = vmatpush1.msra.mxu0 %v51
    %204 = vmatprep.subr.mxu0 0.0
    %205 = vmatpush1.msra.mxu0 %v52
    %206 = vmatprep.subr.mxu0 0.0
    %207 = vmatpush1.msra.mxu0 %v53
    %208 = vmatprep.subr.mxu0 0.0
    %209 = vmatpush1.msra.mxu0 %v54
    %210 = vmatprep.subr.mxu0 0.0
    %211 = vmatpush1.msra.mxu0 %v55
    %212 = vmatprep.subr.mxu0 0.0
    %213 = vmatpush1.msra.mxu0 %v56
    %214 = vmatprep.subr.mxu0 0.0
    %215 = vmatpush1.msra.mxu0 %v57
    %216 = vmatprep.subr.mxu0 0.0
    %217 = vmatpush1.msra.mxu0 %v58
    %218 = vmatprep.subr.mxu0 0.0
    %219 = vmatpush1.msra.mxu0 %v59
    %220 = vmatprep.subr.mxu0 0.0
    %221 = vmatpush1.msra.mxu0 %v60
    %222 = vmatprep.subr.mxu0 0.0
    %223 = vmatpush1.msra.mxu0 %v61
    %224 = vmatprep.subr.mxu0 0.0
    %225 = vmatpush1.msra.mxu0 %v62
    %226 = vmatprep.subr.mxu0 0.0
    %227 = vmatpush1.msra.mxu0 %v63
    %228 = vmatprep.subr.mxu0 0.0
    %229 = vmatpush1.msra.mxu0 %v64
    %230 = vmatprep.subr.mxu0 0.0
    %231 = vmatpush1.msra.mxu0 %v65
    %232 = vmatprep.subr.mxu0 0.0
    %233 = vmatpush1.msra.mxu0 %v66
    %234 = vmatprep.mubr.f32.mxu0 %v28
    %235 = vmatmul.mubr.f32.gmra.mrb[0].mxu0 %v27
    %v236 = vpop.f32.mrb[0].mxu0
    %v237 = vadd.f32 %v168, %v236
    %v238 = vpop.f32.mrb[0].mxu0
    %239 = vdwg.mxu0
    %240 = vmatprep.subr.mxu0 0.0
    %241 = vmatpush1.msra.mxu0 %v67
    %242 = vmatprep.subr.mxu0 0.0
    %243 = vmatpush1.msra.mxu0 %v68
    %244 = vmatprep.subr.mxu0 0.0
    %245 = vmatpush1.msra.mxu0 %v69
    %246 = vmatprep.subr.mxu0 0.0
    %247 = vmatpush1.msra.mxu0 %v70
    %248 = vmatprep.subr.mxu0 0.0
    %249 = vmatpush1.msra.mxu0 %v71
    %250 = vmatprep.subr.mxu0 0.0
    %251 = vmatpush1.msra.mxu0 %v72
    %252 = vmatprep.subr.mxu0 0.0
    %253 = vmatpush1.msra.mxu0 %v73
    %254 = vmatprep.subr.mxu0 0.0
    %255 = vmatpush1.msra.mxu0 %v74
    %256 = vmatprep.subr.mxu0 0.0
    %257 = vmatpush1.msra.mxu0 %v75
    %258 = vmatprep.subr.mxu0 0.0
    %259 = vmatpush1.msra.mxu0 %v76
    %260 = vmatprep.subr.mxu0 0.0
    %261 = vmatpush1.msra.mxu0 %v77
    %262 = vmatprep.subr.mxu0 0.0
    %263 = vmatpush1.msra.mxu0 %v78
    %264 = vmatprep.subr.mxu0 0.0
    %265 = vmatpush1.msra.mxu0 %v79
    %266 = vmatprep.subr.mxu0 0.0
    %267 = vmatpush1.msra.mxu0 %v80
    %268 = vmatprep.subr.mxu0 0.0
    %269 = vmatpush1.msra.mxu0 %v81
    %270 = vmatprep.subr.mxu0 0.0
    %271 = vmatpush1.msra.mxu0 %v82
    %272 = vmatprep.subr.mxu0 0.0
    %273 = vmatpush1.msra.mxu0 %v83
    %274 = vmatprep.subr.mxu0 0.0
    %275 = vmatpush1.msra.mxu0 %v84
    %276 = vmatprep.subr.mxu0 0.0
    %277 = vmatpush1.msra.mxu0 %v85
    %278 = vmatprep.subr.mxu0 0.0
    %279 = vmatpush1.msra.mxu0 %v86
    %280 = vmatprep.subr.mxu0 0.0
    %281 = vmatpush1.msra.mxu0 %v87
    %282 = vmatprep.subr.mxu0 0.0
    %283 = vmatpush1.msra.mxu0 %v88
    %284 = vmatprep.subr.mxu0 0.0
    %285 = vmatpush1.msra.mxu0 %v89
    %286 = vmatprep.subr.mxu0 0.0
    %287 = vmatpush1.msra.mxu0 %v90
    %288 = vmatprep.subr.mxu0 0.0
    %289 = vmatpush1.msra.mxu0 %v91
    %290 = vmatprep.subr.mxu0 0.0
    %291 = vmatpush1.msra.mxu0 %v92
    %292 = vmatprep.subr.mxu0 0.0
    %293 = vmatpush1.msra.mxu0 %v93
    %294 = vmatprep.subr.mxu0 0.0
    %295 = vmatpush1.msra.mxu0 %v94
    %296 = vmatprep.subr.mxu0 0.0
    %297 = vmatpush1.msra.mxu0 %v95
    %298 = vmatprep.subr.mxu0 0.0
    %299 = vmatpush1.msra.mxu0 %v96
    %300 = vmatprep.subr.mxu0 0.0
    %301 = vmatpush1.msra.mxu0 %v97
    %302 = vmatprep.subr.mxu0 0.0
    %303 = vmatpush1.msra.mxu0 %v98
    %304 = vmatprep.mubr.f32.mxu0 %v30
    %305 = vmatmul.mubr.f32.gmra.mrb[0].mxu0 %v29
    %v306 = vpop.f32.mrb[0].mxu0
    %v307 = vadd.f32 %v237, %v306
    %v308 = vpop.f32.mrb[0].mxu0
    %309 = vdwg.mxu0
    %310 = vmatprep.subr.mxu0 0.0
    %311 = vmatpush1.msra.mxu0 %v99
    %312 = vmatprep.subr.mxu0 0.0
    %313 = vmatpush1.msra.mxu0 %v100
    %314 = vmatprep.subr.mxu0 0.0
    %315 = vmatpush1.msra.mxu0 %v101
    %316 = vmatprep.subr.mxu0 0.0
    %317 = vmatpush1.msra.mxu0 %v102
    %318 = vmatprep.subr.mxu0 0.0
    %319 = vmatpush1.msra.mxu0 %v103
    %320 = vmatprep.subr.mxu0 0.0
    %321 = vmatpush1.msra.mxu0 %v104
    %322 = vmatprep.subr.mxu0 0.0
    %323 = vmatpush1.msra.mxu0 %v105
    %324 = vmatprep.subr.mxu0 0.0
    %325 = vmatpush1.msra.mxu0 %v106
    %326 = vmatprep.subr.mxu0 0.0
    %327 = vmatpush1.msra.mxu0 %v107
    %328 = vmatprep.subr.mxu0 0.0
    %329 = vmatpush1.msra.mxu0 %v108
    %330 = vmatprep.subr.mxu0 0.0
    %331 = vmatpush1.msra.mxu0 %v109
    %332 = vmatprep.subr.mxu0 0.0
    %333 = vmatpush1.msra.mxu0 %v110
    %334 = vmatprep.subr.mxu0 0.0
    %335 = vmatpush1.msra.mxu0 %v111
    %336 = vmatprep.subr.mxu0 0.0
    %337 = vmatpush1.msra.mxu0 %v112
    %338 = vmatprep.subr.mxu0 0.0
    %339 = vmatpush1.msra.mxu0 %v113
    %340 = vmatprep.subr.mxu0 0.0
    %341 = vmatpush1.msra.mxu0 %v114
    %342 = vmatprep.subr.mxu0 0.0
    %343 = vmatpush1.msra.mxu0 %v115
    %344 = vmatprep.subr.mxu0 0.0
    %345 = vmatpush1.msra.mxu0 %v116
    %346 = vmatprep.subr.mxu0 0.0
    %347 = vmatpush1.msra.mxu0 %v117
    %348 = vmatprep.subr.mxu0 0.0
    %349 = vmatpush1.msra.mxu0 %v118
    %350 = vmatprep.subr.mxu0 0.0
    %351 = vmatpush1.msra.mxu0 %v119
    %352 = vmatprep.subr.mxu0 0.0
    %353 = vmatpush1.msra.mxu0 %v120
    %354 = vmatprep.subr.mxu0 0.0
    %355 = vmatpush1.msra.mxu0 %v121
    %356 = vmatprep.subr.mxu0 0.0
    %357 = vmatpush1.msra.mxu0 %v122
    %358 = vmatprep.subr.mxu0 0.0
    %359 = vmatpush1.msra.mxu0 %v123
    %360 = vmatprep.subr.mxu0 0.0
    %361 = vmatpush1.msra.mxu0 %v124
    %362 = vmatprep.subr.mxu0 0.0
    %363 = vmatpush1.msra.mxu0 %v125
    %364 = vmatprep.subr.mxu0 0.0
    %365 = vmatpush1.msra.mxu0 %v126
    %366 = vmatprep.subr.mxu0 0.0
    %367 = vmatpush1.msra.mxu0 %v127
    %368 = vmatprep.subr.mxu0 0.0
    %369 = vmatpush1.msra.mxu0 %v128
    %370 = vmatprep.subr.mxu0 0.0
    %371 = vmatpush1.msra.mxu0 %v129
    %372 = vmatprep.subr.mxu0 0.0
    %373 = vmatpush1.msra.mxu0 %v130
    %374 = vmatprep.mubr.f32.mxu0 %v32
    %375 = vmatmul.mubr.f32.gmra.mrb[0].mxu0 %v31
    %v376 = vpop.f32.mrb[0].mxu0
    %v377 = vadd.f32 %v307, %v376
    %v378 = vpop.f32.mrb[0].mxu0
    %379 = vdwg.mxu0
    %380 = vmatprep.subr.mxu0 0.0
    %381 = vmatpush1.msra.mxu0 %v131
    %382 = vmatprep.subr.mxu0 0.0
    %383 = vmatpush1.msra.mxu0 %v132
    %384 = vmatprep.subr.mxu0 0.0
    %385 = vmatpush1.msra.mxu0 %v133
    %386 = vmatprep.subr.mxu0 0.0
    %387 = vmatpush1.msra.mxu0 %v134
    %388 = vmatprep.subr.mxu0 0.0
    %389 = vmatpush1.msra.mxu0 %v135
    %390 = vmatprep.subr.mxu0 0.0
    %391 = vmatpush1.msra.mxu0 %v136
    %392 = vmatprep.subr.mxu0 0.0
    %393 = vmatpush1.msra.mxu0 %v137
    %394 = vmatprep.subr.mxu0 0.0
    %395 = vmatpush1.msra.mxu0 %v138
    %396 = vmatprep.subr.mxu0 0.0
    %397 = vmatpush1.msra.mxu0 %v139
    %398 = vmatprep.subr.mxu0 0.0
    %399 = vmatpush1.msra.mxu0 %v140
    %400 = vmatprep.subr.mxu0 0.0
    %401 = vmatpush1.msra.mxu0 %v141
    %402 = vmatprep.subr.mxu0 0.0
    %403 = vmatpush1.msra.mxu0 %v142
    %404 = vmatprep.subr.mxu0 0.0
    %405 = vmatpush1.msra.mxu0 %v143
    %406 = vmatprep.subr.mxu0 0.0
    %407 = vmatpush1.msra.mxu0 %v144
    %408 = vmatprep.subr.mxu0 0.0
    %409 = vmatpush1.msra.mxu0 %v145
    %410 = vmatprep.subr.mxu0 0.0
    %411 = vmatpush1.msra.mxu0 %v146
    %412 = vmatprep.subr.mxu0 0.0
    %413 = vmatpush1.msra.mxu0 %v147
    %414 = vmatprep.subr.mxu0 0.0
    %415 = vmatpush1.msra.mxu0 %v148
    %416 = vmatprep.subr.mxu0 0.0
    %417 = vmatpush1.msra.mxu0 %v149
    %418 = vmatprep.subr.mxu0 0.0
    %419 = vmatpush1.msra.mxu0 %v150
    %420 = vmatprep.subr.mxu0 0.0
    %421 = vmatpush1.msra.mxu0 %v151
    %422 = vmatprep.subr.mxu0 0.0
    %423 = vmatpush1.msra.mxu0 %v152
    %424 = vmatprep.subr.mxu0 0.0
    %425 = vmatpush1.msra.mxu0 %v153
    %426 = vmatprep.subr.mxu0 0.0
    %427 = vmatpush1.msra.mxu0 %v154
    %428 = vmatprep.subr.mxu0 0.0
    %429 = vmatpush1.msra.mxu0 %v155
    %430 = vmatprep.subr.mxu0 0.0
    %431 = vmatpush1.msra.mxu0 %v156
    %432 = vmatprep.subr.mxu0 0.0
    %433 = vmatpush1.msra.mxu0 %v157
    %434 = vmatprep.subr.mxu0 0.0
    %435 = vmatpush1.msra.mxu0 %v158
    %436 = vmatprep.subr.mxu0 0.0
    %437 = vmatpush1.msra.mxu0 %v159
    %438 = vmatprep.subr.mxu0 0.0
    %439 = vmatpush1.msra.mxu0 %v160
    %440 = vmatprep.subr.mxu0 0.0
    %441 = vmatpush1.msra.mxu0 %v161
    %442 = vmatprep.subr.mxu0 0.0
    %443 = vmatpush1.msra.mxu0 %v162
    %444 = vmatprep.mubr.f32.mxu0 %v34
    %445 = vmatmul.mubr.f32.gmra.mrb[0].mxu0 %v33
    %v446 = vpop.f32.mrb[0].mxu0
    %v447 = vadd.f32 %v377, %v446
    %v448 = vpop.f32.mrb[0].mxu0
    %449 = vdwg.mxu0
    %v450 = vmax.f32 %v447, 0.0
    %v451 = vld [vmem:[%s3] sm:$0xff]
    %v452 = vld [vmem:[%s3 + $0x8] sm:$0xff]
    %v453 = vld [vmem:[%s3 + $0x10] sm:$0xff]
    %v454 = vld [vmem:[%s3 + $0x18] sm:$0xff]
    %v455 = vld [vmem:[%s4] sm:$0x1]
    %v457 = vlaneseq
    %v458 = vshrl.u32 %v457, 7
    %v459 = vsub.s32 0, %v458
    %v460 = vrot.slane %v455, %v459
    %vm462 = vcmask 261120
    %v464 = vsel %vm462, %v450, 0
    %466 = vmatprep.subr.mxu0 0.0
    %467 = vmatpush1.msra.mxu0 %v451
    %468 = vmatprep.subr.mxu0 0.0
    %469 = vmatpush1.msra.mxu0 %v452
    %470 = vmatprep.subr.mxu0 0.0
    %471 = vmatpush1.msra.mxu0 %v453
    %472 = vmatprep.subr.mxu0 0.0
    %473 = vmatpush1.msra.mxu0 %v454
    %474 = vmatprep.subr.mxu0 0.0
    %475 = vmatpush1.msra.mxu0 0.0
    %476 = vmatprep.subr.mxu0 0.0
    %477 = vmatpush1.msra.mxu0 0.0
    %478 = vmatprep.subr.mxu0 0.0
    %479 = vmatpush1.msra.mxu0 0.0
    %480 = vmatprep.subr.mxu0 0.0
    %481 = vmatpush1.msra.mxu0 0.0
    %482 = vmatprep.subr.mxu0 0.0
    %483 = vmatpush1.msra.mxu0 0.0
    %484 = vmatprep.subr.mxu0 0.0
    %485 = vmatpush1.msra.mxu0 0.0
    %486 = vmatprep.subr.mxu0 0.0
    %487 = vmatpush1.msra.mxu0 0.0
    %488 = vmatprep.subr.mxu0 0.0
    %489 = vmatpush1.msra.mxu0 0.0
    %490 = vmatprep.subr.mxu0 0.0
    %491 = vmatpush1.msra.mxu0 0.0
    %492 = vmatprep.subr.mxu0 0.0
    %493 = vmatpush1.msra.mxu0 0.0
    %494 = vmatprep.subr.mxu0 0.0
    %495 = vmatpush1.msra.mxu0 0.0
    %496 = vmatprep.subr.mxu0 0.0
    %497 = vmatpush1.msra.mxu0 0.0
    %498 = vmatprep.subr.mxu0 0.0
    %499 = vmatpush1.msra.mxu0 0.0
    %500 = vmatprep.subr.mxu0 0.0
    %501 = vmatpush1.msra.mxu0 0.0
    %502 = vmatprep.subr.mxu0 0.0
    %503 = vmatpush1.msra.mxu0 0.0
    %504 = vmatprep.subr.mxu0 0.0
    %505 = vmatpush1.msra.mxu0 0.0
    %506 = vmatprep.subr.mxu0 0.0
    %507 = vmatpush1.msra.mxu0 0.0
    %508 = vmatprep.subr.mxu0 0.0
    %509 = vmatpush1.msra.mxu0 0.0
    %510 = vmatprep.subr.mxu0 0.0
    %511 = vmatpush1.msra.mxu0 0.0
    %512 = vmatprep.subr.mxu0 0.0
    %513 = vmatpush1.msra.mxu0 0.0
    %514 = vmatprep.subr.mxu0 0.0
    %515 = vmatpush1.msra.mxu0 0.0
    %516 = vmatprep.subr.mxu0 0.0
    %517 = vmatpush1.msra.mxu0 0.0
    %518 = vmatprep.subr.mxu0 0.0
    %519 = vmatpush1.msra.mxu0 0.0
    %520 = vmatprep.subr.mxu0 0.0
    %521 = vmatpush1.msra.mxu0 0.0
    %522 = vmatprep.subr.mxu0 0.0
    %523 = vmatpush1.msra.mxu0 0.0
    %524 = vmatprep.subr.mxu0 0.0
    %525 = vmatpush1.msra.mxu0 0.0
    %526 = vmatprep.subr.mxu0 0.0
    %527 = vmatpush1.msra.mxu0 0.0
    %528 = vmatprep.subr.mxu0 0.0
    %529 = vmatpush1.msra.mxu0 0.0
    %530 = vmatprep.mubr.f32.mxu0 0.0
    %531 = vmatmul.mubr.f32.gmra.mrb[0].mxu0 %v464
    %v532 = vpop.f32.mrb[0].mxu0
    %v533 = vadd.f32 %v460, %v532
    %v534 = vpop.f32.mrb[0].mxu0
    %535 = vdwg.mxu0
    %v536 = vld [vmem:[%s5] sm:$0xff]
    %v537 = vld [vmem:[%s5 + $0x8] sm:$0xff]
    %v538 = vld [vmem:[%s6] sm:$0x1]
    %v540 = vlaneseq
    %v541 = vshrl.u32 %v540, 7
    %v542 = vsub.s32 0, %v541
    %v543 = vrot.slane %v538, %v542
    %vm545 = vcmask 130048
    %v547 = vsel %vm545, %v533, 0
    %549 = vmatprep.subr.mxu0 0.0
    %550 = vmatpush1.msra.mxu0 %v536
    %551 = vmatprep.subr.mxu0 0.0
    %552 = vmatpush1.msra.mxu0 %v537
    %553 = vmatprep.subr.mxu0 0.0
    %554 = vmatpush1.msra.mxu0 0.0
    %555 = vmatprep.subr.mxu0 0.0
    %556 = vmatpush1.msra.mxu0 0.0
    %557 = vmatprep.subr.mxu0 0.0
    %558 = vmatpush1.msra.mxu0 0.0
    %559 = vmatprep.subr.mxu0 0.0
    %560 = vmatpush1.msra.mxu0 0.0
    %561 = vmatprep.subr.mxu0 0.0
    %562 = vmatpush1.msra.mxu0 0.0
    %563 = vmatprep.subr.mxu0 0.0
    %564 = vmatpush1.msra.mxu0 0.0
    %565 = vmatprep.subr.mxu0 0.0
    %566 = vmatpush1.msra.mxu0 0.0
    %567 = vmatprep.subr.mxu0 0.0
    %568 = vmatpush1.msra.mxu0 0.0
    %569 = vmatprep.subr.mxu0 0.0
    %570 = vmatpush1.msra.mxu0 0.0
    %571 = vmatprep.subr.mxu0 0.0
    %572 = vmatpush1.msra.mxu0 0.0
    %573 = vmatprep.subr.mxu0 0.0
    %574 = vmatpush1.msra.mxu0 0.0
    %575 = vmatprep.subr.mxu0 0.0
    %576 = vmatpush1.msra.mxu0 0.0
    %577 = vmatprep.subr.mxu0 0.0
    %578 = vmatpush1.msra.mxu0 0.0
    %579 = vmatprep.subr.mxu0 0.0
    %580 = vmatpush1.msra.mxu0 0.0
    %581 = vmatprep.subr.mxu0 0.0
    %582 = vmatpush1.msra.mxu0 0.0
    %583 = vmatprep.subr.mxu0 0.0
    %584 = vmatpush1.msra.mxu0 0.0
    %585 = vmatprep.subr.mxu0 0.0
    %586 = vmatpush1.msra.mxu0 0.0
    %587 = vmatprep.subr.mxu0 0.0
    %588 = vmatpush1.msra.mxu0 0.0
    %589 = vmatprep.subr.mxu0 0.0
    %590 = vmatpush1.msra.mxu0 0.0
    %591 = vmatprep.subr.mxu0 0.0
    %592 = vmatpush1.msra.mxu0 0.0
    %593 = vmatprep.subr.mxu0 0.0
    %594 = vmatpush1.msra.mxu0 0.0
    %595 = vmatprep.subr.mxu0 0.0
    %596 = vmatpush1.msra.mxu0 0.0
    %597 = vmatprep.subr.mxu0 0.0
    %598 = vmatpush1.msra.mxu0 0.0
    %599 = vmatprep.subr.mxu0 0.0
    %600 = vmatpush1.msra.mxu0 0.0
    %601 = vmatprep.subr.mxu0 0.0
    %602 = vmatpush1.msra.mxu0 0.0
    %603 = vmatprep.subr.mxu0 0.0
    %604 = vmatpush1.msra.mxu0 0.0
    %605 = vmatprep.subr.mxu0 0.0
    %606 = vmatpush1.msra.mxu0 0.0
    %607 = vmatprep.subr.mxu0 0.0
    %608 = vmatpush1.msra.mxu0 0.0
    %609 = vmatprep.subr.mxu0 0.0
    %610 = vmatpush1.msra.mxu0 0.0
    %611 = vmatprep.subr.mxu0 0.0
    %612 = vmatpush1.msra.mxu0 0.0
    %613 = vmatprep.mubr.f32.mxu0 0.0
    %614 = vmatmul.mubr.f32.gmra.mrb[0].mxu0 %v547
    %v615 = vpop.f32.mrb[0].mxu0
    %v616 = vadd.f32 %v543, %v615
    %v617 = vpop.f32.mrb[0].mxu0
    %618 = vdwg.mxu0
    %619 = vst [vmem:[#allocation2] sm:$0xff] %v616
    // Predicated region
    $region30: #{tpu_custom_call.1} parent=1 // pred_check
      _
    $region31: #{tpu_custom_call.1} parent=1 // pred_check_branch
      %621 = sbr.rel (0) target = $region33
    $region32: #{tpu_custom_call.1} parent=1 // pred_region
      %s623 = ssub.s32 128, 128
      %624 = vsyncadd [#allocation3], %s623
      %s626 = sshll.u32 [#allocation2], 4
      %s627 = int_to_ptr.vmem [resolvable:$true] %s626
      %629 = dma.vmem_to_hbm [thread:$0]  %s627, 128, %s7, [#allocation3]
    $region33: #{tpu_custom_call.1} parent=1 // pred_fallthru
      _
    // Predicated region
    $region34: #{tpu_custom_call.1} parent=1 // pred_check
      _
    $region35: #{tpu_custom_call.1} parent=1 // pred_check_branch
      %631 = sbr.rel (0) target = $region37
    $region36: #{tpu_custom_call.1} parent=1 // pred_region
      %632 = dma.done [#allocation3], 128
    $region37: #{tpu_custom_call.1} parent=1 // pred_fallthru
      _
    %633 = vsyncpa [#allocation3], 1

</llo_original>
